<compile_context>
chip_gen: v7x
topology: tpu7x:2x2x1
jax: 0.10.0
libtpu: 0.0.40
codegen_flags: <defaults>
</compile_context>

<pallas_src>
import math

import jax
import jax.numpy as jnp
from jax import lax
from jax.experimental import pallas as pl
from jax.experimental.pallas import tpu as pltpu


def gru_encoder_kernel(tokens_ref, emb_ref, w_ih_ref, w_hh_ref,
                       bias_x_ref, b_hh_n_ref, h0_ref,
                       out_ref, hn_ref):
    """Fused embedding lookup + single-layer unidirectional GRU forward.

    tokens_ref: (S*B, 1) int32 flattened time-major token ids
    emb_ref:    (V, E)  f32   (padding row already zeroed)
    w_ih_ref:   (E, 3H) f32   gates concatenated [r | z | n] (PyTorch order)
    w_hh_ref:   (H, 3H) f32   same gate layout
    bias_x_ref: (1, 3H) f32   [b_ih_r+b_hh_r | b_ih_z+b_hh_z | b_ih_n]
    b_hh_n_ref: (1, H)  f32   (must stay inside the r*(...) term)
    h0_ref:     (B, H)  f32
    out_ref:    (S*B, H) f32  (wrapper reshapes to (S, B, H))
    hn_ref:     (B, H)  f32
    """
    SB = tokens_ref.shape[0]
    V, E = emb_ref.shape
    B, H = h0_ref.shape
    S = SB // B

    # ---------------- hoisted, non-recurrent work (off the serial chain) ----
    # Embedding lookup for ALL timesteps: one-hot(S*B, V) @ emb(V, E) in
    # standard (rows, contracting) orientation -> no XLU transpose needed.
    tok = tokens_ref[...]                                          # (S*B, 1)
    oh = (lax.broadcasted_iota(jnp.int32, (SB, V), 1) == tok)      # (S*B, V)
    x_all = jnp.dot(oh.astype(jnp.float32), emb_ref[...],
                    preferred_element_type=jnp.float32)            # (S*B, E)

    # nn.Dropout: identity in eval mode.
    # TODO(synk): training-mode dropout would use pltpu.prng_seed / prng_random_bits.

    # Fused input projection for ALL timesteps, biases pre-folded.
    x_gates = jnp.dot(x_all, w_ih_ref[...],
                      preferred_element_type=jnp.float32) + bias_x_ref[...]  # (S*B, 3H)

    # Recurrence weights: cast to bf16 once (MXU-native on v6e/v7x), f32 accum.
    w_hh = w_hh_ref[...].astype(jnp.bfloat16)                      # (H, 3H)
    # Hoisted broadcast (JAX does not CSE broadcast_in_dim inside the loop).
    b_hh_n = jnp.broadcast_to(b_hh_n_ref[...], (B, H))             # (B, H)

    # ---------------- serial recurrence: one fused matmul per step ----------
    h = h0_ref[...]                                                # (B, H) f32
    outs = []
    for t in range(S):                                             # S static -> fully unrolled
        hg = jnp.dot(h.astype(jnp.bfloat16), w_hh,
                     preferred_element_type=jnp.float32)           # (B, 3H)
        xg = x_gates[t * B:(t + 1) * B, :]                         # (B, 3H), static slice
        rz = jax.nn.sigmoid(xg[:, :2 * H] + hg[:, :2 * H])         # r and z in one EUP pass
        r = rz[:, :H]
        z = rz[:, H:]
        n = jnp.tanh(xg[:, 2 * H:] + r * (hg[:, 2 * H:] + b_hh_n))
        h = n + z * (h - n)                                        # == (1-z)*n + z*h
        outs.append(h)

    # One dense store for the whole output instead of S tiny masked stores.
    out_ref[...] = jnp.concatenate(outs, axis=0).astype(out_ref.dtype)
    hn_ref[...] = h.astype(hn_ref.dtype)


def rnn_encoder_forward(tokens, h0, emb, w_ih, w_hh, b_ih, b_hh):
    """RNNEncoder.forward -> (output, hidden) for a 1-layer unidirectional GRU.

    tokens: (S, B) int32; h0: (1, B, H); emb: (V, E);
    w_ih: (3, E, H); w_hh: (3, H, H); b_ih/b_hh: (3, 1, H); gate order [r, z, n].
    """
    S, B = tokens.shape
    H = h0.shape[-1]

    # Fuse the three gates along the output dim -> single matmul per operand.
    w_ih_cat = jnp.concatenate([w_ih[0], w_ih[1], w_ih[2]], axis=-1)   # (E, 3H)
    w_hh_cat = jnp.concatenate([w_hh[0], w_hh[1], w_hh[2]], axis=-1)   # (H, 3H)
    # Fold b_ih (all gates) and b_hh (r, z only) into the precomputed x-projection.
    bias_x = jnp.concatenate([b_ih[0] + b_hh[0],
                              b_ih[1] + b_hh[1],
                              b_ih[2]], axis=-1)                       # (1, 3H)
    b_hh_n = b_hh[2]                                                   # (1, H)

    # TODO(synk): for realistic vocab/embedding sizes (V>=32k, E>=512) the table
    # should stay HBM-resident (memory_space=pl.ANY) with a row gather instead
    # of a whole-table VMEM input + one-hot matmul.
    vmem = pl.BlockSpec(memory_space=pltpu.MemorySpace.VMEM)
    out_flat, hn = pl.pallas_call(
        gru_encoder_kernel,
        out_shape=(jax.ShapeDtypeStruct((S * B, H), jnp.float32),
                   jax.ShapeDtypeStruct((B, H), jnp.float32)),
        in_specs=[vmem] * 7,
        out_specs=(vmem, vmem),
    )(tokens.astype(jnp.int32).reshape(S * B, 1), emb, w_ih_cat, w_hh_cat,
      bias_x, b_hh_n, h0[0])
    return out_flat.reshape(S, B, H), hn.reshape(1, B, H)


def rnn_encoder_reference(tokens, h0, emb, w_ih, w_hh, b_ih, b_hh):
    """Pure-JAX f32 reference (embedding -> eval-mode dropout -> GRU via scan)."""
    x = emb[tokens]                                                    # (S, B, E)

    def step(h, x_t):
        r = jax.nn.sigmoid(x_t @ w_ih[0] + b_ih[0] + h @ w_hh[0] + b_hh[0])
        z = jax.nn.sigmoid(x_t @ w_ih[1] + b_ih[1] + h @ w_hh[1] + b_hh[1])
        n = jnp.tanh(x_t @ w_ih[2] + b_ih[2] + r * (h @ w_hh[2] + b_hh[2]))
        h_new = (1.0 - z) * n + z * h
        return h_new, h_new

    h_last, ys = lax.scan(step, h0[0], x)
    return ys, h_last[None]


def init_hidden(batch_size, hidden_size, num_layers=1, num_directions=1):
    return jnp.zeros((num_layers * num_directions, batch_size, hidden_size),
                     jnp.float32)


if __name__ == "__main__":
    # Module hyperparameters (small, consistent with the forward contract).
    input_size = 16        # vocab size
    embedding_dim = 32
    hidden_size = 32
    num_layers = 1         # kernel implements a single-layer, unidirectional GRU
    bidirectional = False
    pad_token = 0
    seq_len, batch = 8, 2

    key = jax.random.PRNGKey(0)
    k_emb, k_wih, k_whh, k_bih, k_bhh, k_tok = jax.random.split(key, 6)

    # nn.Embedding: N(0, 1) init, padding row zeroed.
    emb = jax.random.normal(k_emb, (input_size, embedding_dim), jnp.float32)
    emb = emb.at[pad_token].set(0.0)

    # nn.GRU: U(-1/sqrt(H), 1/sqrt(H)) init; gates stacked as [r, z, n].
    bound = 1.0 / math.sqrt(hidden_size)
    w_ih = jax.random.uniform(k_wih, (3, embedding_dim, hidden_size),
                              jnp.float32, -bound, bound)
    w_hh = jax.random.uniform(k_whh, (3, hidden_size, hidden_size),
                              jnp.float32, -bound, bound)
    b_ih = jax.random.uniform(k_bih, (3, 1, hidden_size),
                              jnp.float32, -bound, bound)
    b_hh = jax.random.uniform(k_bhh, (3, 1, hidden_size),
                              jnp.float32, -bound, bound)

    # Inputs: (seq_len, batch) token ids, zero initial hidden state.
    tokens = jax.random.randint(k_tok, (seq_len, batch), 0, input_size, jnp.int32)
    h0 = init_hidden(batch, hidden_size)

    output, hidden = rnn_encoder_forward(tokens, h0, emb, w_ih, w_hh, b_ih, b_hh)
    output = jax.block_until_ready(output)
    hidden = jax.block_until_ready(hidden)

    assert output.shape == (seq_len, batch, hidden_size)
    assert hidden.shape == (num_layers * 1, batch, hidden_size)
    assert bool(jnp.all(jnp.isfinite(output))) and bool(jnp.all(jnp.isfinite(hidden)))

    # Correctness vs pure-JAX f32 reference (tolerance covers bf16 MXU operands
    # in the recurrence; gross bugs like gate-order/bias errors are >> 3e-2).
    ref_out, ref_hid = rnn_encoder_reference(tokens, h0, emb, w_ih, w_hh, b_ih, b_hh)
    assert bool(jnp.allclose(output, ref_out, atol=3e-2, rtol=3e-2))
    assert bool(jnp.allclose(hidden, ref_hid, atol=3e-2, rtol=3e-2))

    print("KERNEL_OK")
</pallas_src>

<mosaic_0001>
module attributes {stable_mosaic.version = 11 : i64} {
  func.func @gru_encoder_kernel(%arg0: memref<16x1xi32, #tpu.memory_space<vmem>>, %arg1: memref<16x32xf32, #tpu.memory_space<vmem>>, %arg2: memref<32x96xf32, #tpu.memory_space<vmem>>, %arg3: memref<32x96xf32, #tpu.memory_space<vmem>>, %arg4: memref<1x96xf32, #tpu.memory_space<vmem>>, %arg5: memref<1x32xf32, #tpu.memory_space<vmem>>, %arg6: memref<2x32xf32, #tpu.memory_space<vmem>>, %arg7: memref<16x32xf32, #tpu.memory_space<vmem>>, %arg8: memref<2x32xf32, #tpu.memory_space<vmem>>) attributes {dimension_semantics = [], scalar_prefetch = 0 : i64, scratch_operands = 0 : i64, tpu.core_type = #tpu.core_type<tc>} {
    %c0 = arith.constant 0 : index
    %c0_0 = arith.constant 0 : index
    %0 = vector.load %arg0[%c0, %c0_0] : memref<16x1xi32, #tpu.memory_space<vmem>>, vector<16x1xi32>
    %1 = tpu.iota {dimensions = array<i32: 1>} : vector<16x16xi32>
    %2 = vector.broadcast %0 : vector<16x1xi32> to vector<16x16xi32>
    %3 = arith.cmpi eq, %1, %2 : vector<16x16xi32>
    %4 = arith.extui %3 : vector<16x16xi1> to vector<16x16xi32>
    %5 = arith.sitofp %4 : vector<16x16xi32> to vector<16x16xf32>
    %c0_1 = arith.constant 0 : index
    %c0_2 = arith.constant 0 : index
    %6 = vector.load %arg1[%c0_1, %c0_2] : memref<16x32xf32, #tpu.memory_space<vmem>>, vector<16x32xf32>
    %cst = arith.constant dense<0.000000e+00> : vector<16x32xf32>
    %7 = tpu.matmul %5, %6, %cst {dimension_numbers = #tpu.dot_dimension_numbers<[1], [0], [0], [1], [0, 0, 1, 1], [], []>} : vector<16x16xf32>, vector<16x32xf32>, vector<16x32xf32> -> vector<16x32xf32>
    %c0_3 = arith.constant 0 : index
    %c0_4 = arith.constant 0 : index
    %8 = vector.load %arg2[%c0_3, %c0_4] : memref<32x96xf32, #tpu.memory_space<vmem>>, vector<32x96xf32>
    %cst_5 = arith.constant dense<0.000000e+00> : vector<16x96xf32>
    %9 = tpu.matmul %7, %8, %cst_5 {dimension_numbers = #tpu.dot_dimension_numbers<[1], [0], [0], [1], [0, 0, 1, 1], [], []>} : vector<16x32xf32>, vector<32x96xf32>, vector<16x96xf32> -> vector<16x96xf32>
    %c0_6 = arith.constant 0 : index
    %c0_7 = arith.constant 0 : index
    %10 = vector.load %arg4[%c0_6, %c0_7] : memref<1x96xf32, #tpu.memory_space<vmem>>, vector<1x96xf32>
    %11 = vector.broadcast %10 : vector<1x96xf32> to vector<16x96xf32>
    %12 = arith.addf %9, %11 : vector<16x96xf32>
    %c0_8 = arith.constant 0 : index
    %c0_9 = arith.constant 0 : index
    %13 = vector.load %arg3[%c0_8, %c0_9] : memref<32x96xf32, #tpu.memory_space<vmem>>, vector<32x96xf32>
    %14 = arith.truncf %13 : vector<32x96xf32> to vector<32x96xbf16>
    %c0_10 = arith.constant 0 : index
    %c0_11 = arith.constant 0 : index
    %15 = vector.load %arg5[%c0_10, %c0_11] : memref<1x32xf32, #tpu.memory_space<vmem>>, vector<1x32xf32>
    %16 = vector.shape_cast %15 : vector<1x32xf32> to vector<1x32xf32>
    %17 = vector.broadcast %16 : vector<1x32xf32> to vector<2x32xf32>
    %c0_12 = arith.constant 0 : index
    %c0_13 = arith.constant 0 : index
    %18 = vector.load %arg6[%c0_12, %c0_13] : memref<2x32xf32, #tpu.memory_space<vmem>>, vector<2x32xf32>
    %19 = arith.truncf %18 : vector<2x32xf32> to vector<2x32xbf16>
    %cst_14 = arith.constant dense<0.000000e+00> : vector<2x96xf32>
    %20 = tpu.matmul %19, %14, %cst_14 {dimension_numbers = #tpu.dot_dimension_numbers<[1], [0], [0], [1], [0, 0, 1, 1], [], []>} : vector<2x32xbf16>, vector<32x96xbf16>, vector<2x96xf32> -> vector<2x96xf32>
    %21 = vector.extract_strided_slice %12 {offsets = [0, 0], sizes = [2, 96], strides = [1, 1]} : vector<16x96xf32> to vector<2x96xf32>
    %22 = vector.extract_strided_slice %21 {offsets = [0, 0], sizes = [2, 64], strides = [1, 1]} : vector<2x96xf32> to vector<2x64xf32>
    %23 = vector.extract_strided_slice %20 {offsets = [0, 0], sizes = [2, 64], strides = [1, 1]} : vector<2x96xf32> to vector<2x64xf32>
    %24 = arith.addf %22, %23 : vector<2x64xf32>
    %25 = arith.negf %24 : vector<2x64xf32>
    %26 = math.exp %25 : vector<2x64xf32>
    %cst_15 = arith.constant 1.000000e+00 : f32
    %27 = vector.broadcast %cst_15 : f32 to vector<2x64xf32>
    %28 = arith.addf %27, %26 : vector<2x64xf32>
    %29 = arith.divf %27, %28 : vector<2x64xf32>
    %30 = vector.extract_strided_slice %29 {offsets = [0, 0], sizes = [2, 32], strides = [1, 1]} : vector<2x64xf32> to vector<2x32xf32>
    %31 = vector.extract_strided_slice %29 {offsets = [0, 32], sizes = [2, 32], strides = [1, 1]} : vector<2x64xf32> to vector<2x32xf32>
    %32 = vector.extract_strided_slice %21 {offsets = [0, 64], sizes = [2, 32], strides = [1, 1]} : vector<2x96xf32> to vector<2x32xf32>
    %33 = vector.extract_strided_slice %20 {offsets = [0, 64], sizes = [2, 32], strides = [1, 1]} : vector<2x96xf32> to vector<2x32xf32>
    %34 = arith.addf %33, %17 : vector<2x32xf32>
    %35 = arith.mulf %30, %34 : vector<2x32xf32>
    %36 = arith.addf %32, %35 : vector<2x32xf32>
    %37 = math.tanh %36 : vector<2x32xf32>
    %38 = arith.subf %18, %37 : vector<2x32xf32>
    %39 = arith.mulf %31, %38 : vector<2x32xf32>
    %40 = arith.addf %37, %39 : vector<2x32xf32>
    %41 = arith.truncf %40 : vector<2x32xf32> to vector<2x32xbf16>
    %cst_16 = arith.constant dense<0.000000e+00> : vector<2x96xf32>
    %42 = tpu.matmul %41, %14, %cst_16 {dimension_numbers = #tpu.dot_dimension_numbers<[1], [0], [0], [1], [0, 0, 1, 1], [], []>} : vector<2x32xbf16>, vector<32x96xbf16>, vector<2x96xf32> -> vector<2x96xf32>
    %43 = vector.extract_strided_slice %12 {offsets = [2, 0], sizes = [2, 96], strides = [1, 1]} : vector<16x96xf32> to vector<2x96xf32>
    %44 = vector.extract_strided_slice %43 {offsets = [0, 0], sizes = [2, 64], strides = [1, 1]} : vector<2x96xf32> to vector<2x64xf32>
    %45 = vector.extract_strided_slice %42 {offsets = [0, 0], sizes = [2, 64], strides = [1, 1]} : vector<2x96xf32> to vector<2x64xf32>
    %46 = arith.addf %44, %45 : vector<2x64xf32>
    %47 = arith.negf %46 : vector<2x64xf32>
    %48 = math.exp %47 : vector<2x64xf32>
    %cst_17 = arith.constant 1.000000e+00 : f32
    %49 = vector.broadcast %cst_17 : f32 to vector<2x64xf32>
    %50 = arith.addf %49, %48 : vector<2x64xf32>
    %51 = arith.divf %49, %50 : vector<2x64xf32>
    %52 = vector.extract_strided_slice %51 {offsets = [0, 0], sizes = [2, 32], strides = [1, 1]} : vector<2x64xf32> to vector<2x32xf32>
    %53 = vector.extract_strided_slice %51 {offsets = [0, 32], sizes = [2, 32], strides = [1, 1]} : vector<2x64xf32> to vector<2x32xf32>
    %54 = vector.extract_strided_slice %43 {offsets = [0, 64], sizes = [2, 32], strides = [1, 1]} : vector<2x96xf32> to vector<2x32xf32>
    %55 = vector.extract_strided_slice %42 {offsets = [0, 64], sizes = [2, 32], strides = [1, 1]} : vector<2x96xf32> to vector<2x32xf32>
    %56 = arith.addf %55, %17 : vector<2x32xf32>
    %57 = arith.mulf %52, %56 : vector<2x32xf32>
    %58 = arith.addf %54, %57 : vector<2x32xf32>
    %59 = math.tanh %58 : vector<2x32xf32>
    %60 = arith.subf %40, %59 : vector<2x32xf32>
    %61 = arith.mulf %53, %60 : vector<2x32xf32>
    %62 = arith.addf %59, %61 : vector<2x32xf32>
    %63 = arith.truncf %62 : vector<2x32xf32> to vector<2x32xbf16>
    %cst_18 = arith.constant dense<0.000000e+00> : vector<2x96xf32>
    %64 = tpu.matmul %63, %14, %cst_18 {dimension_numbers = #tpu.dot_dimension_numbers<[1], [0], [0], [1], [0, 0, 1, 1], [], []>} : vector<2x32xbf16>, vector<32x96xbf16>, vector<2x96xf32> -> vector<2x96xf32>
    %65 = vector.extract_strided_slice %12 {offsets = [4, 0], sizes = [2, 96], strides = [1, 1]} : vector<16x96xf32> to vector<2x96xf32>
    %66 = vector.extract_strided_slice %65 {offsets = [0, 0], sizes = [2, 64], strides = [1, 1]} : vector<2x96xf32> to vector<2x64xf32>
    %67 = vector.extract_strided_slice %64 {offsets = [0, 0], sizes = [2, 64], strides = [1, 1]} : vector<2x96xf32> to vector<2x64xf32>
    %68 = arith.addf %66, %67 : vector<2x64xf32>
    %69 = arith.negf %68 : vector<2x64xf32>
    %70 = math.exp %69 : vector<2x64xf32>
    %cst_19 = arith.constant 1.000000e+00 : f32
    %71 = vector.broadcast %cst_19 : f32 to vector<2x64xf32>
    %72 = arith.addf %71, %70 : vector<2x64xf32>
    %73 = arith.divf %71, %72 : vector<2x64xf32>
    %74 = vector.extract_strided_slice %73 {offsets = [0, 0], sizes = [2, 32], strides = [1, 1]} : vector<2x64xf32> to vector<2x32xf32>
    %75 = vector.extract_strided_slice %73 {offsets = [0, 32], sizes = [2, 32], strides = [1, 1]} : vector<2x64xf32> to vector<2x32xf32>
    %76 = vector.extract_strided_slice %65 {offsets = [0, 64], sizes = [2, 32], strides = [1, 1]} : vector<2x96xf32> to vector<2x32xf32>
    %77 = vector.extract_strided_slice %64 {offsets = [0, 64], sizes = [2, 32], strides = [1, 1]} : vector<2x96xf32> to vector<2x32xf32>
    %78 = arith.addf %77, %17 : vector<2x32xf32>
    %79 = arith.mulf %74, %78 : vector<2x32xf32>
    %80 = arith.addf %76, %79 : vector<2x32xf32>
    %81 = math.tanh %80 : vector<2x32xf32>
    %82 = arith.subf %62, %81 : vector<2x32xf32>
    %83 = arith.mulf %75, %82 : vector<2x32xf32>
    %84 = arith.addf %81, %83 : vector<2x32xf32>
    %85 = arith.truncf %84 : vector<2x32xf32> to vector<2x32xbf16>
    %cst_20 = arith.constant dense<0.000000e+00> : vector<2x96xf32>
    %86 = tpu.matmul %85, %14, %cst_20 {dimension_numbers = #tpu.dot_dimension_numbers<[1], [0], [0], [1], [0, 0, 1, 1], [], []>} : vector<2x32xbf16>, vector<32x96xbf16>, vector<2x96xf32> -> vector<2x96xf32>
    %87 = vector.extract_strided_slice %12 {offsets = [6, 0], sizes = [2, 96], strides = [1, 1]} : vector<16x96xf32> to vector<2x96xf32>
    %88 = vector.extract_strided_slice %87 {offsets = [0, 0], sizes = [2, 64], strides = [1, 1]} : vector<2x96xf32> to vector<2x64xf32>
    %89 = vector.extract_strided_slice %86 {offsets = [0, 0], sizes = [2, 64], strides = [1, 1]} : vector<2x96xf32> to vector<2x64xf32>
    %90 = arith.addf %88, %89 : vector<2x64xf32>
    %91 = arith.negf %90 : vector<2x64xf32>
    %92 = math.exp %91 : vector<2x64xf32>
    %cst_21 = arith.constant 1.000000e+00 : f32
    %93 = vector.broadcast %cst_21 : f32 to vector<2x64xf32>
    %94 = arith.addf %93, %92 : vector<2x64xf32>
    %95 = arith.divf %93, %94 : vector<2x64xf32>
    %96 = vector.extract_strided_slice %95 {offsets = [0, 0], sizes = [2, 32], strides = [1, 1]} : vector<2x64xf32> to vector<2x32xf32>
    %97 = vector.extract_strided_slice %95 {offsets = [0, 32], sizes = [2, 32], strides = [1, 1]} : vector<2x64xf32> to vector<2x32xf32>
    %98 = vector.extract_strided_slice %87 {offsets = [0, 64], sizes = [2, 32], strides = [1, 1]} : vector<2x96xf32> to vector<2x32xf32>
    %99 = vector.extract_strided_slice %86 {offsets = [0, 64], sizes = [2, 32], strides = [1, 1]} : vector<2x96xf32> to vector<2x32xf32>
    %100 = arith.addf %99, %17 : vector<2x32xf32>
    %101 = arith.mulf %96, %100 : vector<2x32xf32>
    %102 = arith.addf %98, %101 : vector<2x32xf32>
    %103 = math.tanh %102 : vector<2x32xf32>
    %104 = arith.subf %84, %103 : vector<2x32xf32>
    %105 = arith.mulf %97, %104 : vector<2x32xf32>
    %106 = arith.addf %103, %105 : vector<2x32xf32>
    %107 = arith.truncf %106 : vector<2x32xf32> to vector<2x32xbf16>
    %cst_22 = arith.constant dense<0.000000e+00> : vector<2x96xf32>
    %108 = tpu.matmul %107, %14, %cst_22 {dimension_numbers = #tpu.dot_dimension_numbers<[1], [0], [0], [1], [0, 0, 1, 1], [], []>} : vector<2x32xbf16>, vector<32x96xbf16>, vector<2x96xf32> -> vector<2x96xf32>
    %109 = vector.extract_strided_slice %12 {offsets = [8, 0], sizes = [2, 96], strides = [1, 1]} : vector<16x96xf32> to vector<2x96xf32>
    %110 = vector.extract_strided_slice %109 {offsets = [0, 0], sizes = [2, 64], strides = [1, 1]} : vector<2x96xf32> to vector<2x64xf32>
    %111 = vector.extract_strided_slice %108 {offsets = [0, 0], sizes = [2, 64], strides = [1, 1]} : vector<2x96xf32> to vector<2x64xf32>
    %112 = arith.addf %110, %111 : vector<2x64xf32>
    %113 = arith.negf %112 : vector<2x64xf32>
    %114 = math.exp %113 : vector<2x64xf32>
    %cst_23 = arith.constant 1.000000e+00 : f32
    %115 = vector.broadcast %cst_23 : f32 to vector<2x64xf32>
    %116 = arith.addf %115, %114 : vector<2x64xf32>
    %117 = arith.divf %115, %116 : vector<2x64xf32>
    %118 = vector.extract_strided_slice %117 {offsets = [0, 0], sizes = [2, 32], strides = [1, 1]} : vector<2x64xf32> to vector<2x32xf32>
    %119 = vector.extract_strided_slice %117 {offsets = [0, 32], sizes = [2, 32], strides = [1, 1]} : vector<2x64xf32> to vector<2x32xf32>
    %120 = vector.extract_strided_slice %109 {offsets = [0, 64], sizes = [2, 32], strides = [1, 1]} : vector<2x96xf32> to vector<2x32xf32>
    %121 = vector.extract_strided_slice %108 {offsets = [0, 64], sizes = [2, 32], strides = [1, 1]} : vector<2x96xf32> to vector<2x32xf32>
    %122 = arith.addf %121, %17 : vector<2x32xf32>
    %123 = arith.mulf %118, %122 : vector<2x32xf32>
    %124 = arith.addf %120, %123 : vector<2x32xf32>
    %125 = math.tanh %124 : vector<2x32xf32>
    %126 = arith.subf %106, %125 : vector<2x32xf32>
    %127 = arith.mulf %119, %126 : vector<2x32xf32>
    %128 = arith.addf %125, %127 : vector<2x32xf32>
    %129 = arith.truncf %128 : vector<2x32xf32> to vector<2x32xbf16>
    %cst_24 = arith.constant dense<0.000000e+00> : vector<2x96xf32>
    %130 = tpu.matmul %129, %14, %cst_24 {dimension_numbers = #tpu.dot_dimension_numbers<[1], [0], [0], [1], [0, 0, 1, 1], [], []>} : vector<2x32xbf16>, vector<32x96xbf16>, vector<2x96xf32> -> vector<2x96xf32>
    %131 = vector.extract_strided_slice %12 {offsets = [10, 0], sizes = [2, 96], strides = [1, 1]} : vector<16x96xf32> to vector<2x96xf32>
    %132 = vector.extract_strided_slice %131 {offsets = [0, 0], sizes = [2, 64], strides = [1, 1]} : vector<2x96xf32> to vector<2x64xf32>
    %133 = vector.extract_strided_slice %130 {offsets = [0, 0], sizes = [2, 64], strides = [1, 1]} : vector<2x96xf32> to vector<2x64xf32>
    %134 = arith.addf %132, %133 : vector<2x64xf32>
    %135 = arith.negf %134 : vector<2x64xf32>
    %136 = math.exp %135 : vector<2x64xf32>
    %cst_25 = arith.constant 1.000000e+00 : f32
    %137 = vector.broadcast %cst_25 : f32 to vector<2x64xf32>
    %138 = arith.addf %137, %136 : vector<2x64xf32>
    %139 = arith.divf %137, %138 : vector<2x64xf32>
    %140 = vector.extract_strided_slice %139 {offsets = [0, 0], sizes = [2, 32], strides = [1, 1]} : vector<2x64xf32> to vector<2x32xf32>
    %141 = vector.extract_strided_slice %139 {offsets = [0, 32], sizes = [2, 32], strides = [1, 1]} : vector<2x64xf32> to vector<2x32xf32>
    %142 = vector.extract_strided_slice %131 {offsets = [0, 64], sizes = [2, 32], strides = [1, 1]} : vector<2x96xf32> to vector<2x32xf32>
    %143 = vector.extract_strided_slice %130 {offsets = [0, 64], sizes = [2, 32], strides = [1, 1]} : vector<2x96xf32> to vector<2x32xf32>
    %144 = arith.addf %143, %17 : vector<2x32xf32>
    %145 = arith.mulf %140, %144 : vector<2x32xf32>
    %146 = arith.addf %142, %145 : vector<2x32xf32>
    %147 = math.tanh %146 : vector<2x32xf32>
    %148 = arith.subf %128, %147 : vector<2x32xf32>
    %149 = arith.mulf %141, %148 : vector<2x32xf32>
    %150 = arith.addf %147, %149 : vector<2x32xf32>
    %151 = arith.truncf %150 : vector<2x32xf32> to vector<2x32xbf16>
    %cst_26 = arith.constant dense<0.000000e+00> : vector<2x96xf32>
    %152 = tpu.matmul %151, %14, %cst_26 {dimension_numbers = #tpu.dot_dimension_numbers<[1], [0], [0], [1], [0, 0, 1, 1], [], []>} : vector<2x32xbf16>, vector<32x96xbf16>, vector<2x96xf32> -> vector<2x96xf32>
    %153 = vector.extract_strided_slice %12 {offsets = [12, 0], sizes = [2, 96], strides = [1, 1]} : vector<16x96xf32> to vector<2x96xf32>
    %154 = vector.extract_strided_slice %153 {offsets = [0, 0], sizes = [2, 64], strides = [1, 1]} : vector<2x96xf32> to vector<2x64xf32>
    %155 = vector.extract_strided_slice %152 {offsets = [0, 0], sizes = [2, 64], strides = [1, 1]} : vector<2x96xf32> to vector<2x64xf32>
    %156 = arith.addf %154, %155 : vector<2x64xf32>
    %157 = arith.negf %156 : vector<2x64xf32>
    %158 = math.exp %157 : vector<2x64xf32>
    %cst_27 = arith.constant 1.000000e+00 : f32
    %159 = vector.broadcast %cst_27 : f32 to vector<2x64xf32>
    %160 = arith.addf %159, %158 : vector<2x64xf32>
    %161 = arith.divf %159, %160 : vector<2x64xf32>
    %162 = vector.extract_strided_slice %161 {offsets = [0, 0], sizes = [2, 32], strides = [1, 1]} : vector<2x64xf32> to vector<2x32xf32>
    %163 = vector.extract_strided_slice %161 {offsets = [0, 32], sizes = [2, 32], strides = [1, 1]} : vector<2x64xf32> to vector<2x32xf32>
    %164 = vector.extract_strided_slice %153 {offsets = [0, 64], sizes = [2, 32], strides = [1, 1]} : vector<2x96xf32> to vector<2x32xf32>
    %165 = vector.extract_strided_slice %152 {offsets = [0, 64], sizes = [2, 32], strides = [1, 1]} : vector<2x96xf32> to vector<2x32xf32>
    %166 = arith.addf %165, %17 : vector<2x32xf32>
    %167 = arith.mulf %162, %166 : vector<2x32xf32>
    %168 = arith.addf %164, %167 : vector<2x32xf32>
    %169 = math.tanh %168 : vector<2x32xf32>
    %170 = arith.subf %150, %169 : vector<2x32xf32>
    %171 = arith.mulf %163, %170 : vector<2x32xf32>
    %172 = arith.addf %169, %171 : vector<2x32xf32>
    %173 = arith.truncf %172 : vector<2x32xf32> to vector<2x32xbf16>
    %cst_28 = arith.constant dense<0.000000e+00> : vector<2x96xf32>
    %174 = tpu.matmul %173, %14, %cst_28 {dimension_numbers = #tpu.dot_dimension_numbers<[1], [0], [0], [1], [0, 0, 1, 1], [], []>} : vector<2x32xbf16>, vector<32x96xbf16>, vector<2x96xf32> -> vector<2x96xf32>
    %175 = vector.extract_strided_slice %12 {offsets = [14, 0], sizes = [2, 96], strides = [1, 1]} : vector<16x96xf32> to vector<2x96xf32>
    %176 = vector.extract_strided_slice %175 {offsets = [0, 0], sizes = [2, 64], strides = [1, 1]} : vector<2x96xf32> to vector<2x64xf32>
    %177 = vector.extract_strided_slice %174 {offsets = [0, 0], sizes = [2, 64], strides = [1, 1]} : vector<2x96xf32> to vector<2x64xf32>
    %178 = arith.addf %176, %177 : vector<2x64xf32>
    %179 = arith.negf %178 : vector<2x64xf32>
    %180 = math.exp %179 : vector<2x64xf32>
    %cst_29 = arith.constant 1.000000e+00 : f32
    %181 = vector.broadcast %cst_29 : f32 to vector<2x64xf32>
    %182 = arith.addf %181, %180 : vector<2x64xf32>
    %183 = arith.divf %181, %182 : vector<2x64xf32>
    %184 = vector.extract_strided_slice %183 {offsets = [0, 0], sizes = [2, 32], strides = [1, 1]} : vector<2x64xf32> to vector<2x32xf32>
    %185 = vector.extract_strided_slice %183 {offsets = [0, 32], sizes = [2, 32], strides = [1, 1]} : vector<2x64xf32> to vector<2x32xf32>
    %186 = vector.extract_strided_slice %175 {offsets = [0, 64], sizes = [2, 32], strides = [1, 1]} : vector<2x96xf32> to vector<2x32xf32>
    %187 = vector.extract_strided_slice %174 {offsets = [0, 64], sizes = [2, 32], strides = [1, 1]} : vector<2x96xf32> to vector<2x32xf32>
    %188 = arith.addf %187, %17 : vector<2x32xf32>
    %189 = arith.mulf %184, %188 : vector<2x32xf32>
    %190 = arith.addf %186, %189 : vector<2x32xf32>
    %191 = math.tanh %190 : vector<2x32xf32>
    %192 = arith.subf %172, %191 : vector<2x32xf32>
    %193 = arith.mulf %185, %192 : vector<2x32xf32>
    %194 = arith.addf %191, %193 : vector<2x32xf32>
    %195 = tpu.concatenate %40, %62, %84, %106, %128, %150, %172, %194 in 0 : vector<2x32xf32>, vector<2x32xf32>, vector<2x32xf32>, vector<2x32xf32>, vector<2x32xf32>, vector<2x32xf32>, vector<2x32xf32>, vector<2x32xf32> -> vector<16x32xf32>
    %c0_30 = arith.constant 0 : index
    %c0_31 = arith.constant 0 : index
    %196 = vector.load %arg7[%c0_30, %c0_31] : memref<16x32xf32, #tpu.memory_space<vmem>>, vector<16x32xf32>
    tpu.vector_store %arg7[%c0_30, %c0_31], %195 {strides = array<i32>} : memref<16x32xf32, #tpu.memory_space<vmem>>, vector<16x32xf32>,
    %c0_32 = arith.constant 0 : index
    %c0_33 = arith.constant 0 : index
    %197 = vector.load %arg8[%c0_32, %c0_33] : memref<2x32xf32, #tpu.memory_space<vmem>>, vector<2x32xf32>
    tpu.vector_store %arg8[%c0_32, %c0_33], %194 {strides = array<i32>} : memref<2x32xf32, #tpu.memory_space<vmem>>, vector<2x32xf32>,
    return
  }
}

</mosaic_0001>

<llo_original>
// kernel: tpu_custom_call.1
$region0: #{tpu_custom_call.1}
  #allocation0 [shape = 'u32[]', space=smem, size = 0x4, offset = 0x4, fixed_abs, tag = 'smem constant byte address 0x4 - core index']
  #allocation1 [shape = 'u32[144,128]{1,0:T(1,128)}', space=vmem, size = 0x12000, scoped, tag = 'internal scratch']
  %s0 = inlined_call_operand.vmem [shape: s32[16,1], index: 0, kind: input, shape index: {}]
  %s1 = inlined_call_operand.vmem [shape: f32[16,32], index: 1, kind: input, shape index: {}]
  %s2 = inlined_call_operand.hbm [shape: f32[32,96], index: 2, kind: input, shape index: {}]
  %s3 = inlined_call_operand.hbm [shape: f32[32,96], index: 3, kind: input, shape index: {}]
  %s4 = inlined_call_operand.vmem [shape: f32[1,96], index: 4, kind: input, shape index: {}]
  %s5 = inlined_call_operand.vmem [shape: f32[1,32], index: 5, kind: input, shape index: {}]
  %s6 = inlined_call_operand.vmem [shape: f32[2,32], index: 6, kind: input, shape index: {}]
  %s7 = inlined_call_operand.hbm [shape: f32[16,32], index: 7, kind: output, shape index: {0}]
  %s8 = inlined_call_operand.hbm [shape: f32[2,32], index: 8, kind: output, shape index: {1}]
  %9 = xla_tuple %s7, %s8
  %s10 = sld [smem:[#allocation0]]
  $region54: #{tpu_custom_call.1} parent=0
    _
  %s12 = ssub.s32 1, %s10
  %s13 = scalar_select 0, %s12, %s10
  $region1: #{tpu_custom_call.1} parent=0
    #allocation2 [shape = 'u8[16384]{0}', space=vmem, size = 0x4000, scoped, tag = 'input window, operand 2, single buffered']
    #allocation3 [shape = 's32[1]{0}', space=sflag, size = 0x4, scoped, tag = 'scoped memory for tpu_custom_call.1']
    #allocation4 [shape = 's32[1]{0}', space=sflag, size = 0x4, scoped, tag = 'scoped memory for tpu_custom_call.1']
    #allocation5 [shape = 'u8[16384]{0}', space=vmem, size = 0x4000, scoped, tag = 'input window, operand 3, single buffered']
    #allocation6 [shape = 's32[1]{0}', space=sflag, size = 0x4, scoped, tag = 'scoped memory for tpu_custom_call.1']
    #allocation7 [shape = 'u8[8192]{0}', space=vmem, size = 0x2000, scoped, tag = 'output window, operand 0, single buffered']
    #allocation8 [shape = 'u8[1024]{0}', space=vmem, size = 0x400, scoped, tag = 'output window, operand 1, single buffered']
    #allocation9 [shape = 's32[1]{0}', space=sflag, size = 0x4, scoped, tag = 'scoped memory for tpu_custom_call.1']
    %14 = vsyncpa [#allocation3], 0
    %15 = vsyncpa [#allocation6], 0
    %16 = vsyncpa [#allocation4], 0
    %17 = vsyncpa [#allocation9], 0
    // Predicated region
    $region2: #{tpu_custom_call.1} parent=1 // pred_check
      _
    $region3: #{tpu_custom_call.1} parent=1 // pred_check_branch
      %19 = sbr.rel (0) target = $region5
    $region4: #{tpu_custom_call.1} parent=1 // pred_region
      _
    $region5: #{tpu_custom_call.1} parent=1 // pred_fallthru
      _
    // Predicated region
    $region6: #{tpu_custom_call.1} parent=1 // pred_check
      _
    $region7: #{tpu_custom_call.1} parent=1 // pred_check_branch
      %21 = sbr.rel (0) target = $region9
    $region8: #{tpu_custom_call.1} parent=1 // pred_region
      _
    $region9: #{tpu_custom_call.1} parent=1 // pred_fallthru
      _
    // Predicated region
    $region10: #{tpu_custom_call.1} parent=1 // pred_check
      _
    $region11: #{tpu_custom_call.1} parent=1 // pred_check_branch
      %23 = sbr.rel (0) target = $region13
    $region12: #{tpu_custom_call.1} parent=1 // pred_region
      %s25 = ssub.s32 512, 512
      %26 = vsyncadd [#allocation3], %s25
      %s27 = sshll.u32 [#allocation2], 4
      %s28 = int_to_ptr.vmem [resolvable:$true] %s27
      %33 = dma.hbm_to_vmem [thread:$0]  %s2, 512, %s28, [#allocation3], 128, 128, 8
    $region13: #{tpu_custom_call.1} parent=1 // pred_fallthru
      _
    // Predicated region
    $region14: #{tpu_custom_call.1} parent=1 // pred_check
      _
    $region15: #{tpu_custom_call.1} parent=1 // pred_check_branch
      %35 = sbr.rel (0) target = $region17
    $region16: #{tpu_custom_call.1} parent=1 // pred_region
      %s37 = ssub.s32 512, 512
      %38 = vsyncadd [#allocation6], %s37
      %s39 = sshll.u32 [#allocation5], 4
      %s40 = int_to_ptr.vmem [resolvable:$true] %s39
      %45 = dma.hbm_to_vmem [thread:$0]  %s3, 512, %s40, [#allocation6], 128, 128, 8
    $region17: #{tpu_custom_call.1} parent=1 // pred_fallthru
      _
    // Predicated region
    $region18: #{tpu_custom_call.1} parent=1 // pred_check
      _
    $region19: #{tpu_custom_call.1} parent=1 // pred_check_branch
      %47 = sbr.rel (0) target = $region21
    $region20: #{tpu_custom_call.1} parent=1 // pred_region
      _
    $region21: #{tpu_custom_call.1} parent=1 // pred_fallthru
      _
    // Predicated region
    $region22: #{tpu_custom_call.1} parent=1 // pred_check
      _
    $region23: #{tpu_custom_call.1} parent=1 // pred_check_branch
      %49 = sbr.rel (0) target = $region25
    $region24: #{tpu_custom_call.1} parent=1 // pred_region
      _
    $region25: #{tpu_custom_call.1} parent=1 // pred_fallthru
      _
    // Predicated region
    $region26: #{tpu_custom_call.1} parent=1 // pred_check
      _
    $region27: #{tpu_custom_call.1} parent=1 // pred_check_branch
      %51 = sbr.rel (0) target = $region29
    $region28: #{tpu_custom_call.1} parent=1 // pred_region
      _
    $region29: #{tpu_custom_call.1} parent=1 // pred_fallthru
      _
    // Predicated region
    $region30: #{tpu_custom_call.1} parent=1 // pred_check
      _
    $region31: #{tpu_custom_call.1} parent=1 // pred_check_branch
      %53 = sbr.rel (0) target = $region33
    $region32: #{tpu_custom_call.1} parent=1 // pred_region
      %54 = dma.done [#allocation3], 512
    $region33: #{tpu_custom_call.1} parent=1 // pred_fallthru
      _
    // Predicated region
    $region34: #{tpu_custom_call.1} parent=1 // pred_check
      _
    $region35: #{tpu_custom_call.1} parent=1 // pred_check_branch
      %56 = sbr.rel (0) target = $region37
    $region36: #{tpu_custom_call.1} parent=1 // pred_region
      %57 = dma.done [#allocation6], 512
    $region37: #{tpu_custom_call.1} parent=1 // pred_fallthru
      _
    %v59 = vld [vmem:[%s0] sm:$0xff]
    %v60 = vld [vmem:[%s0 + $0x8] sm:$0xff]
    %v61 = vlaneseq
    %v62 = vand.u32 %v61, 127
    %63 = vset.pattern.permute.xlu0 0
    %64 = vperm.xlu0 %63, %v59
    %v65 = vpop.permute.xlu0 %64
    %66 = vset.pattern.permute.xlu0 0
    %67 = vperm.xlu0 %66, %v60
    %v68 = vpop.permute.xlu0 %67
    %vm69 = vcmp.eq.s32.totalorder %v62, %v65
    %vm70 = vcmp.eq.s32.totalorder %v62, %v68
    %v71 = vsel %vm69, 1, 0
    %v72 = vsel %vm70, 1, 0
    %v73 = vcvt.s32.f32 %v71
    %v74 = vcvt.s32.f32 %v72
    %v75 = vld [vmem:[%s1] sm:$0xff]
    %v76 = vld [vmem:[%s1 + $0x8] sm:$0xff]
    %vm77 = vcmask 130048
    %v79 = vsel %vm77, %v73, 0
    %v82 = vsel %vm77, %v74, 0
    %84 = vmatprep.subr.mxu0 0.0
    %85 = vmatpush1.msra.mxu0 %v75
    %86 = vmatprep.subr.mxu0 0.0
    %87 = vmatpush1.msra.mxu0 %v76
    %88 = vmatprep.subr.mxu0 0.0
    %89 = vmatpush1.msra.mxu0 0.0
    %90 = vmatprep.subr.mxu0 0.0
    %91 = vmatpush1.msra.mxu0 0.0
    %92 = vmatprep.subr.mxu0 0.0
    %93 = vmatpush1.msra.mxu0 0.0
    %94 = vmatprep.subr.mxu0 0.0
    %95 = vmatpush1.msra.mxu0 0.0
    %96 = vmatprep.subr.mxu0 0.0
    %97 = vmatpush1.msra.mxu0 0.0
    %98 = vmatprep.subr.mxu0 0.0
    %99 = vmatpush1.msra.mxu0 0.0
    %100 = vmatprep.subr.mxu0 0.0
    %101 = vmatpush1.msra.mxu0 0.0
    %102 = vmatprep.subr.mxu0 0.0
    %103 = vmatpush1.msra.mxu0 0.0
    %104 = vmatprep.subr.mxu0 0.0
    %105 = vmatpush1.msra.mxu0 0.0
    %106 = vmatprep.subr.mxu0 0.0
    %107 = vmatpush1.msra.mxu0 0.0
    %108 = vmatprep.subr.mxu0 0.0
    %109 = vmatpush1.msra.mxu0 0.0
    %110 = vmatprep.subr.mxu0 0.0
    %111 = vmatpush1.msra.mxu0 0.0
    %112 = vmatprep.subr.mxu0 0.0
    %113 = vmatpush1.msra.mxu0 0.0
    %114 = vmatprep.subr.mxu0 0.0
    %115 = vmatpush1.msra.mxu0 0.0
    %116 = vmatprep.subr.mxu0 0.0
    %117 = vmatpush1.msra.mxu0 0.0
    %118 = vmatprep.subr.mxu0 0.0
    %119 = vmatpush1.msra.mxu0 0.0
    %120 = vmatprep.subr.mxu0 0.0
    %121 = vmatpush1.msra.mxu0 0.0
    %122 = vmatprep.subr.mxu0 0.0
    %123 = vmatpush1.msra.mxu0 0.0
    %124 = vmatprep.subr.mxu0 0.0
    %125 = vmatpush1.msra.mxu0 0.0
    %126 = vmatprep.subr.mxu0 0.0
    %127 = vmatpush1.msra.mxu0 0.0
    %128 = vmatprep.subr.mxu0 0.0
    %129 = vmatpush1.msra.mxu0 0.0
    %130 = vmatprep.subr.mxu0 0.0
    %131 = vmatpush1.msra.mxu0 0.0
    %132 = vmatprep.subr.mxu0 0.0
    %133 = vmatpush1.msra.mxu0 0.0
    %134 = vmatprep.subr.mxu0 0.0
    %135 = vmatpush1.msra.mxu0 0.0
    %136 = vmatprep.subr.mxu0 0.0
    %137 = vmatpush1.msra.mxu0 0.0
    %138 = vmatprep.subr.mxu0 0.0
    %139 = vmatpush1.msra.mxu0 0.0
    %140 = vmatprep.subr.mxu0 0.0
    %141 = vmatpush1.msra.mxu0 0.0
    %142 = vmatprep.subr.mxu0 0.0
    %143 = vmatpush1.msra.mxu0 0.0
    %144 = vmatprep.subr.mxu0 0.0
    %145 = vmatpush1.msra.mxu0 0.0
    %146 = vmatprep.subr.mxu0 0.0
    %147 = vmatpush1.msra.mxu0 0.0
    %148 = vmatprep.mubr.f32.mxu0 0.0
    %149 = vmatmul.mubr.f32.gmra.mrb[0].mxu0 %v79
    %v150 = vpop.f32.mrb[0].mxu0
    %v151 = vadd.f32 0.0, %v150
    %v152 = vpop.f32.mrb[0].mxu0
    %153 = vmatprep.mubr.f32.mxu0 0.0
    %154 = vmatmul.mubr.f32.gmra.mrb[0].mxu0 %v82
    %v155 = vpop.f32.mrb[0].mxu0
    %v156 = vadd.f32 0.0, %v155
    %v157 = vpop.f32.mrb[0].mxu0
    %158 = vdwg.mxu0
    %v159 = vld [vmem:[#allocation2] sm:$0xff]
    %v160 = vld [vmem:[#allocation2 + $0x8] sm:$0xff]
    %v161 = vld [vmem:[#allocation2 + $0x10] sm:$0xff]
    %v162 = vld [vmem:[#allocation2 + $0x18] sm:$0xff]
    %v163 = vld [vmem:[%s4] sm:$0x1]
    %v165 = vlaneseq
    %v166 = vshrl.u32 %v165, 7
    %v167 = vsub.s32 0, %v166
    %v168 = vrot.slane %v163, %v167
    %vm170 = vcmask 261120
    %v172 = vsel %vm170, %v151, 0
    %v175 = vsel %vm170, %v156, 0
    %177 = vmatprep.subr.mxu0 0.0
    %178 = vmatpush1.msra.mxu0 %v159
    %179 = vmatprep.subr.mxu0 0.0
    %180 = vmatpush1.msra.mxu0 %v160
    %181 = vmatprep.subr.mxu0 0.0
    %182 = vmatpush1.msra.mxu0 %v161
    %183 = vmatprep.subr.mxu0 0.0
    %184 = vmatpush1.msra.mxu0 %v162
    %185 = vmatprep.subr.mxu0 0.0
    %186 = vmatpush1.msra.mxu0 0.0
    %187 = vmatprep.subr.mxu0 0.0
    %188 = vmatpush1.msra.mxu0 0.0
    %189 = vmatprep.subr.mxu0 0.0
    %190 = vmatpush1.msra.mxu0 0.0
    %191 = vmatprep.subr.mxu0 0.0
    %192 = vmatpush1.msra.mxu0 0.0
    %193 = vmatprep.subr.mxu0 0.0
    %194 = vmatpush1.msra.mxu0 0.0
    %195 = vmatprep.subr.mxu0 0.0
    %196 = vmatpush1.msra.mxu0 0.0
    %197 = vmatprep.subr.mxu0 0.0
    %198 = vmatpush1.msra.mxu0 0.0
    %199 = vmatprep.subr.mxu0 0.0
    %200 = vmatpush1.msra.mxu0 0.0
    %201 = vmatprep.subr.mxu0 0.0
    %202 = vmatpush1.msra.mxu0 0.0
    %203 = vmatprep.subr.mxu0 0.0
    %204 = vmatpush1.msra.mxu0 0.0
    %205 = vmatprep.subr.mxu0 0.0
    %206 = vmatpush1.msra.mxu0 0.0
    %207 = vmatprep.subr.mxu0 0.0
    %208 = vmatpush1.msra.mxu0 0.0
    %209 = vmatprep.subr.mxu0 0.0
    %210 = vmatpush1.msra.mxu0 0.0
    %211 = vmatprep.subr.mxu0 0.0
    %212 = vmatpush1.msra.mxu0 0.0
    %213 = vmatprep.subr.mxu0 0.0
    %214 = vmatpush1.msra.mxu0 0.0
    %215 = vmatprep.subr.mxu0 0.0
    %216 = vmatpush1.msra.mxu0 0.0
    %217 = vmatprep.subr.mxu0 0.0
    %218 = vmatpush1.msra.mxu0 0.0
    %219 = vmatprep.subr.mxu0 0.0
    %220 = vmatpush1.msra.mxu0 0.0
    %221 = vmatprep.subr.mxu0 0.0
    %222 = vmatpush1.msra.mxu0 0.0
    %223 = vmatprep.subr.mxu0 0.0
    %224 = vmatpush1.msra.mxu0 0.0
    %225 = vmatprep.subr.mxu0 0.0
    %226 = vmatpush1.msra.mxu0 0.0
    %227 = vmatprep.subr.mxu0 0.0
    %228 = vmatpush1.msra.mxu0 0.0
    %229 = vmatprep.subr.mxu0 0.0
    %230 = vmatpush1.msra.mxu0 0.0
    %231 = vmatprep.subr.mxu0 0.0
    %232 = vmatpush1.msra.mxu0 0.0
    %233 = vmatprep.subr.mxu0 0.0
    %234 = vmatpush1.msra.mxu0 0.0
    %235 = vmatprep.subr.mxu0 0.0
    %236 = vmatpush1.msra.mxu0 0.0
    %237 = vmatprep.subr.mxu0 0.0
    %238 = vmatpush1.msra.mxu0 0.0
    %239 = vmatprep.subr.mxu0 0.0
    %240 = vmatpush1.msra.mxu0 0.0
    %241 = vmatprep.mubr.f32.mxu0 0.0
    %242 = vmatmul.mubr.f32.gmra.mrb[0].mxu0 %v172
    %v243 = vpop.f32.mrb[0].mxu0
    %v244 = vadd.f32 %v168, %v243
    %v245 = vpop.f32.mrb[0].mxu0
    %246 = vmatprep.mubr.f32.mxu0 0.0
    %247 = vmatmul.mubr.f32.gmra.mrb[0].mxu0 %v175
    %v248 = vpop.f32.mrb[0].mxu0
    %v249 = vadd.f32 %v168, %v248
    %v250 = vpop.f32.mrb[0].mxu0
    %251 = vdwg.mxu0
    %v252 = vld [vmem:[#allocation5] sm:$0xff]
    %v253 = vld [vmem:[#allocation5 + $0x8] sm:$0xff]
    %v254 = vld [vmem:[#allocation5 + $0x10] sm:$0xff]
    %v255 = vld [vmem:[#allocation5 + $0x18] sm:$0xff]
    %v256 = vpack.c.bf16 %v253, %v252
    %v257 = vpack.c.bf16 %v255, %v254
    %v258 = vld [vmem:[%s5] sm:$0x1]
    %v260 = vlaneseq
    %v261 = vshrl.u32 %v260, 7
    %v262 = vsub.s32 0, %v261
    %v263 = vrot.slane %v258, %v262
    %v264 = vld [vmem:[%s6] sm:$0x3]
    %v265 = vpack.c.bf16 %v264, %v264
    %v267 = vsel %vm170, %v265, 0
    %269 = vmatprep.subr.bf16.mxu0 0
    %270 = vmatpush1.bf16.msra.mxu0 %v256
    %271 = vmatprep.subr.bf16.mxu0 0
    %272 = vmatpush1.bf16.msra.mxu0 %v257
    %273 = vmatprep.subr.bf16.mxu0 0
    %274 = vmatpush1.bf16.msra.mxu0 0
    %275 = vmatprep.subr.bf16.mxu0 0
    %276 = vmatpush1.bf16.msra.mxu0 0
    %277 = vmatprep.subr.bf16.mxu0 0
    %278 = vmatpush1.bf16.msra.mxu0 0
    %279 = vmatprep.subr.bf16.mxu0 0
    %280 = vmatpush1.bf16.msra.mxu0 0
    %281 = vmatprep.subr.bf16.mxu0 0
    %282 = vmatpush1.bf16.msra.mxu0 0
    %283 = vmatprep.subr.bf16.mxu0 0
    %284 = vmatpush1.bf16.msra.mxu0 0
    %285 = vmatprep.subr.bf16.mxu0 0
    %286 = vmatpush1.bf16.msra.mxu0 0
    %287 = vmatprep.subr.bf16.mxu0 0
    %288 = vmatpush1.bf16.msra.mxu0 0
    %289 = vmatprep.subr.bf16.mxu0 0
    %290 = vmatpush1.bf16.msra.mxu0 0
    %291 = vmatprep.subr.bf16.mxu0 0
    %292 = vmatpush1.bf16.msra.mxu0 0
    %293 = vmatprep.subr.bf16.mxu0 0
    %294 = vmatpush1.bf16.msra.mxu0 0
    %295 = vmatprep.subr.bf16.mxu0 0
    %296 = vmatpush1.bf16.msra.mxu0 0
    %297 = vmatprep.subr.bf16.mxu0 0
    %298 = vmatpush1.bf16.msra.mxu0 0
    %299 = vmatprep.subr.bf16.mxu0 0
    %300 = vmatpush1.bf16.msra.mxu0 0
    %301 = vmatprep.mubr.bf16.mxu0 0
    %302 = vmatmul.mubr.bf16.gmra.mrb[0].mxu0 %v267
    %v303 = vpop.f32.mrb[0].mxu0
    %v304 = vadd.f32 0.0, %v303
    %v305 = vpop.f32.mrb[0].mxu0
    %v306 = vpop.f32.mrb[0].mxu0
    %v307 = vpop.f32.mrb[0].mxu0
    %308 = vdwg.mxu0
    %v309 = vadd.f32 %v244, %v304
    %v310 = vxor.u32 %v309, 2147483648
    %v311 = vmul.f32 %v310, 1.442695
    %v312 = vpow.pop %v311
    %v313 = vadd.f32 %v312, 1.0
    %v314 = vrcp.pop %v313
    %v315 = vmul.f32 1.0, %v314
    %316 = vrot.lane.b32.xlu0 %v263, 64
    %v317 = vpop.permute.xlu0 %316
    %v319 = vadd.f32 %v304, %v317
    %321 = vrot.lane.b32.xlu0 %v319, 64
    %v322 = vpop.permute.xlu0 %321
    %v324 = vmul.f32 %v315, %v322
    %326 = vrot.lane.b32.xlu0 %v324, 64
    %v327 = vpop.permute.xlu0 %326
    %v329 = vadd.f32 %v244, %v327
    %v330 = vtanh.pop %v329
    %332 = vrot.lane.b32.xlu0 %v330, 64
    %v333 = vpop.permute.xlu0 %332
    %v335 = vsub.f32 %v264, %v333
    %337 = vrot.lane.b32.xlu0 %v335, 32
    %v338 = vpop.permute.xlu0 %337
    %v340 = vmul.f32 %v315, %v338
    %342 = vrot.lane.b32.xlu0 %v340, 32
    %v343 = vpop.permute.xlu0 %342
    %v345 = vadd.f32 %v330, %v343
    %v346 = vpack.c.bf16 %v345, %v345
    %348 = vrot.lane.b32.xlu0 %v346, 64
    %v349 = vpop.permute.xlu0 %348
    %v351 = vsel %vm170, %v349, 0
    %353 = vmatprep.subr.bf16.mxu0 0
    %354 = vmatpush1.bf16.msra.mxu0 %v256
    %355 = vmatprep.subr.bf16.mxu0 0
    %356 = vmatpush1.bf16.msra.mxu0 %v257
    %357 = vmatprep.subr.bf16.mxu0 0
    %358 = vmatpush1.bf16.msra.mxu0 0
    %359 = vmatprep.subr.bf16.mxu0 0
    %360 = vmatpush1.bf16.msra.mxu0 0
    %361 = vmatprep.subr.bf16.mxu0 0
    %362 = vmatpush1.bf16.msra.mxu0 0
    %363 = vmatprep.subr.bf16.mxu0 0
    %364 = vmatpush1.bf16.msra.mxu0 0
    %365 = vmatprep.subr.bf16.mxu0 0
    %366 = vmatpush1.bf16.msra.mxu0 0
    %367 = vmatprep.subr.bf16.mxu0 0
    %368 = vmatpush1.bf16.msra.mxu0 0
    %369 = vmatprep.subr.bf16.mxu0 0
    %370 = vmatpush1.bf16.msra.mxu0 0
    %371 = vmatprep.subr.bf16.mxu0 0
    %372 = vmatpush1.bf16.msra.mxu0 0
    %373 = vmatprep.subr.bf16.mxu0 0
    %374 = vmatpush1.bf16.msra.mxu0 0
    %375 = vmatprep.subr.bf16.mxu0 0
    %376 = vmatpush1.bf16.msra.mxu0 0
    %377 = vmatprep.subr.bf16.mxu0 0
    %378 = vmatpush1.bf16.msra.mxu0 0
    %379 = vmatprep.subr.bf16.mxu0 0
    %380 = vmatpush1.bf16.msra.mxu0 0
    %381 = vmatprep.subr.bf16.mxu0 0
    %382 = vmatpush1.bf16.msra.mxu0 0
    %383 = vmatprep.subr.bf16.mxu0 0
    %384 = vmatpush1.bf16.msra.mxu0 0
    %385 = vmatprep.mubr.bf16.mxu0 0
    %386 = vmatmul.mubr.bf16.gmra.mrb[0].mxu0 %v351
    %v387 = vpop.f32.mrb[0].mxu0
    %v388 = vadd.f32 0.0, %v387
    %v389 = vpop.f32.mrb[0].mxu0
    %v390 = vpop.f32.mrb[0].mxu0
    %v391 = vpop.f32.mrb[0].mxu0
    %392 = vdwg.mxu0
    %v394 = vrot.slane %v388, 6
    %v396 = vadd.f32 %v244, %v394
    %v397 = vxor.u32 %v396, 2147483648
    %v398 = vmul.f32 %v397, 1.442695
    %v399 = vpow.pop %v398
    %v400 = vadd.f32 %v399, 1.0
    %v401 = vrcp.pop %v400
    %v402 = vmul.f32 1.0, %v401
    %v403 = vadd.f32 %v388, %v317
    %v405 = vrot.slane %v403, 6
    %406 = vrot.lane.b32.xlu0 %v405, 64
    %v407 = vpop.permute.xlu0 %406
    %v409 = vmul.f32 %v402, %v407
    %411 = vrot.lane.b32.xlu0 %v409, 64
    %v412 = vpop.permute.xlu0 %411
    %v414 = vadd.f32 %v244, %v412
    %v415 = vtanh.pop %v414
    %v417 = vrot.slane %v415, 2
    %v419 = vsub.f32 %v345, %v417
    %v421 = vrot.slane %v419, 6
    %422 = vrot.lane.b32.xlu0 %v421, 96
    %v423 = vpop.permute.xlu0 %422
    %v425 = vmul.f32 %v402, %v423
    %427 = vrot.lane.b32.xlu0 %v425, 32
    %v428 = vpop.permute.xlu0 %427
    %v430 = vadd.f32 %v415, %v428
    %v431 = vpack.c.bf16 %v430, %v430
    %v433 = vrot.slane %v431, 1
    %434 = vrot.lane.b32.xlu0 %v433, 64
    %v435 = vpop.permute.xlu0 %434
    %v437 = vsel %vm170, %v435, 0
    %439 = vmatprep.subr.bf16.mxu0 0
    %440 = vmatpush1.bf16.msra.mxu0 %v256
    %441 = vmatprep.subr.bf16.mxu0 0
    %442 = vmatpush1.bf16.msra.mxu0 %v257
    %443 = vmatprep.subr.bf16.mxu0 0
    %444 = vmatpush1.bf16.msra.mxu0 0
    %445 = vmatprep.subr.bf16.mxu0 0
    %446 = vmatpush1.bf16.msra.mxu0 0
    %447 = vmatprep.subr.bf16.mxu0 0
    %448 = vmatpush1.bf16.msra.mxu0 0
    %449 = vmatprep.subr.bf16.mxu0 0
    %450 = vmatpush1.bf16.msra.mxu0 0
    %451 = vmatprep.subr.bf16.mxu0 0
    %452 = vmatpush1.bf16.msra.mxu0 0
    %453 = vmatprep.subr.bf16.mxu0 0
    %454 = vmatpush1.bf16.msra.mxu0 0
    %455 = vmatprep.subr.bf16.mxu0 0
    %456 = vmatpush1.bf16.msra.mxu0 0
    %457 = vmatprep.subr.bf16.mxu0 0
    %458 = vmatpush1.bf16.msra.mxu0 0
    %459 = vmatprep.subr.bf16.mxu0 0
    %460 = vmatpush1.bf16.msra.mxu0 0
    %461 = vmatprep.subr.bf16.mxu0 0
    %462 = vmatpush1.bf16.msra.mxu0 0
    %463 = vmatprep.subr.bf16.mxu0 0
    %464 = vmatpush1.bf16.msra.mxu0 0
    %465 = vmatprep.subr.bf16.mxu0 0
    %466 = vmatpush1.bf16.msra.mxu0 0
    %467 = vmatprep.subr.bf16.mxu0 0
    %468 = vmatpush1.bf16.msra.mxu0 0
    %469 = vmatprep.subr.bf16.mxu0 0
    %470 = vmatpush1.bf16.msra.mxu0 0
    %471 = vmatprep.mubr.bf16.mxu0 0
    %472 = vmatmul.mubr.bf16.gmra.mrb[0].mxu0 %v437
    %v473 = vpop.f32.mrb[0].mxu0
    %v474 = vadd.f32 0.0, %v473
    %v475 = vpop.f32.mrb[0].mxu0
    %v476 = vpop.f32.mrb[0].mxu0
    %v477 = vpop.f32.mrb[0].mxu0
    %478 = vdwg.mxu0
    %v480 = vrot.slane %v474, 4
    %v482 = vadd.f32 %v244, %v480
    %v483 = vxor.u32 %v482, 2147483648
    %v484 = vmul.f32 %v483, 1.442695
    %v485 = vpow.pop %v484
    %v486 = vadd.f32 %v485, 1.0
    %v487 = vrcp.pop %v486
    %v488 = vmul.f32 1.0, %v487
    %v489 = vadd.f32 %v474, %v317
    %v491 = vrot.slane %v489, 4
    %492 = vrot.lane.b32.xlu0 %v491, 64
    %v493 = vpop.permute.xlu0 %492
    %v495 = vmul.f32 %v488, %v493
    %497 = vrot.lane.b32.xlu0 %v495, 64
    %v498 = vpop.permute.xlu0 %497
    %v500 = vadd.f32 %v244, %v498
    %v501 = vtanh.pop %v500
    %v503 = vrot.slane %v501, 2
    %v505 = vsub.f32 %v430, %v503
    %v507 = vrot.slane %v505, 6
    %508 = vrot.lane.b32.xlu0 %v507, 96
    %v509 = vpop.permute.xlu0 %508
    %v511 = vmul.f32 %v488, %v509
    %513 = vrot.lane.b32.xlu0 %v511, 32
    %v514 = vpop.permute.xlu0 %513
    %v516 = vadd.f32 %v501, %v514
    %v517 = vpack.c.bf16 %v516, %v516
    %v519 = vrot.slane %v517, 2
    %520 = vrot.lane.b32.xlu0 %v519, 64
    %v521 = vpop.permute.xlu0 %520
    %v523 = vsel %vm170, %v521, 0
    %525 = vmatprep.subr.bf16.mxu0 0
    %526 = vmatpush1.bf16.msra.mxu0 %v256
    %527 = vmatprep.subr.bf16.mxu0 0
    %528 = vmatpush1.bf16.msra.mxu0 %v257
    %529 = vmatprep.subr.bf16.mxu0 0
    %530 = vmatpush1.bf16.msra.mxu0 0
    %531 = vmatprep.subr.bf16.mxu0 0
    %532 = vmatpush1.bf16.msra.mxu0 0
    %533 = vmatprep.subr.bf16.mxu0 0
    %534 = vmatpush1.bf16.msra.mxu0 0
    %535 = vmatprep.subr.bf16.mxu0 0
    %536 = vmatpush1.bf16.msra.mxu0 0
    %537 = vmatprep.subr.bf16.mxu0 0
    %538 = vmatpush1.bf16.msra.mxu0 0
    %539 = vmatprep.subr.bf16.mxu0 0
    %540 = vmatpush1.bf16.msra.mxu0 0
    %541 = vmatprep.subr.bf16.mxu0 0
    %542 = vmatpush1.bf16.msra.mxu0 0
    %543 = vmatprep.subr.bf16.mxu0 0
    %544 = vmatpush1.bf16.msra.mxu0 0
    %545 = vmatprep.subr.bf16.mxu0 0
    %546 = vmatpush1.bf16.msra.mxu0 0
    %547 = vmatprep.subr.bf16.mxu0 0
    %548 = vmatpush1.bf16.msra.mxu0 0
    %549 = vmatprep.subr.bf16.mxu0 0
    %550 = vmatpush1.bf16.msra.mxu0 0
    %551 = vmatprep.subr.bf16.mxu0 0
    %552 = vmatpush1.bf16.msra.mxu0 0
    %553 = vmatprep.subr.bf16.mxu0 0
    %554 = vmatpush1.bf16.msra.mxu0 0
    %555 = vmatprep.subr.bf16.mxu0 0
    %556 = vmatpush1.bf16.msra.mxu0 0
    %557 = vmatprep.mubr.bf16.mxu0 0
    %558 = vmatmul.mubr.bf16.gmra.mrb[0].mxu0 %v523
    %v559 = vpop.f32.mrb[0].mxu0
    %v560 = vadd.f32 0.0, %v559
    %v561 = vpop.f32.mrb[0].mxu0
    %v562 = vpop.f32.mrb[0].mxu0
    %v563 = vpop.f32.mrb[0].mxu0
    %564 = vdwg.mxu0
    %v566 = vrot.slane %v560, 2
    %v568 = vadd.f32 %v244, %v566
    %v569 = vxor.u32 %v568, 2147483648
    %v570 = vmul.f32 %v569, 1.442695
    %v571 = vpow.pop %v570
    %v572 = vadd.f32 %v571, 1.0
    %v573 = vrcp.pop %v572
    %v574 = vmul.f32 1.0, %v573
    %v575 = vadd.f32 %v560, %v317
    %v577 = vrot.slane %v575, 2
    %578 = vrot.lane.b32.xlu0 %v577, 64
    %v579 = vpop.permute.xlu0 %578
    %v581 = vmul.f32 %v574, %v579
    %583 = vrot.lane.b32.xlu0 %v581, 64
    %v584 = vpop.permute.xlu0 %583
    %v586 = vadd.f32 %v244, %v584
    %v587 = vtanh.pop %v586
    %v589 = vrot.slane %v587, 2
    %v591 = vsub.f32 %v516, %v589
    %v593 = vrot.slane %v591, 6
    %594 = vrot.lane.b32.xlu0 %v593, 96
    %v595 = vpop.permute.xlu0 %594
    %v597 = vmul.f32 %v574, %v595
    %599 = vrot.lane.b32.xlu0 %v597, 32
    %v600 = vpop.permute.xlu0 %599
    %v602 = vadd.f32 %v587, %v600
    %v603 = vpack.c.bf16 %v602, %v602
    %v605 = vrot.slane %v603, 3
    %606 = vrot.lane.b32.xlu0 %v605, 64
    %v607 = vpop.permute.xlu0 %606
    %v609 = vsel %vm170, %v607, 0
    %611 = vmatprep.subr.bf16.mxu0 0
    %612 = vmatpush1.bf16.msra.mxu0 %v256
    %613 = vmatprep.subr.bf16.mxu0 0
    %614 = vmatpush1.bf16.msra.mxu0 %v257
    %615 = vmatprep.subr.bf16.mxu0 0
    %616 = vmatpush1.bf16.msra.mxu0 0
    %617 = vmatprep.subr.bf16.mxu0 0
    %618 = vmatpush1.bf16.msra.mxu0 0
    %619 = vmatprep.subr.bf16.mxu0 0
    %620 = vmatpush1.bf16.msra.mxu0 0
    %621 = vmatprep.subr.bf16.mxu0 0
    %622 = vmatpush1.bf16.msra.mxu0 0
    %623 = vmatprep.subr.bf16.mxu0 0
    %624 = vmatpush1.bf16.msra.mxu0 0
    %625 = vmatprep.subr.bf16.mxu0 0
    %626 = vmatpush1.bf16.msra.mxu0 0
    %627 = vmatprep.subr.bf16.mxu0 0
    %628 = vmatpush1.bf16.msra.mxu0 0
    %629 = vmatprep.subr.bf16.mxu0 0
    %630 = vmatpush1.bf16.msra.mxu0 0
    %631 = vmatprep.subr.bf16.mxu0 0
    %632 = vmatpush1.bf16.msra.mxu0 0
    %633 = vmatprep.subr.bf16.mxu0 0
    %634 = vmatpush1.bf16.msra.mxu0 0
    %635 = vmatprep.subr.bf16.mxu0 0
    %636 = vmatpush1.bf16.msra.mxu0 0
    %637 = vmatprep.subr.bf16.mxu0 0
    %638 = vmatpush1.bf16.msra.mxu0 0
    %639 = vmatprep.subr.bf16.mxu0 0
    %640 = vmatpush1.bf16.msra.mxu0 0
    %641 = vmatprep.subr.bf16.mxu0 0
    %642 = vmatpush1.bf16.msra.mxu0 0
    %643 = vmatprep.mubr.bf16.mxu0 0
    %644 = vmatmul.mubr.bf16.gmra.mrb[0].mxu0 %v609
    %v645 = vpop.f32.mrb[0].mxu0
    %v646 = vadd.f32 0.0, %v645
    %v647 = vpop.f32.mrb[0].mxu0
    %v648 = vpop.f32.mrb[0].mxu0
    %v649 = vpop.f32.mrb[0].mxu0
    %650 = vdwg.mxu0
    %v651 = vadd.f32 %v249, %v646
    %v652 = vxor.u32 %v651, 2147483648
    %v653 = vmul.f32 %v652, 1.442695
    %v654 = vpow.pop %v653
    %v655 = vadd.f32 %v654, 1.0
    %v656 = vrcp.pop %v655
    %v657 = vmul.f32 1.0, %v656
    %v658 = vadd.f32 %v646, %v317
    %660 = vrot.lane.b32.xlu0 %v658, 64
    %v661 = vpop.permute.xlu0 %660
    %v663 = vmul.f32 %v657, %v661
    %665 = vrot.lane.b32.xlu0 %v663, 64
    %v666 = vpop.permute.xlu0 %665
    %v668 = vadd.f32 %v249, %v666
    %v669 = vtanh.pop %v668
    %v671 = vrot.slane %v669, 2
    %v673 = vsub.f32 %v602, %v671
    %v675 = vrot.slane %v673, 6
    %676 = vrot.lane.b32.xlu0 %v675, 96
    %v677 = vpop.permute.xlu0 %676
    %v679 = vmul.f32 %v657, %v677
    %681 = vrot.lane.b32.xlu0 %v679, 32
    %v682 = vpop.permute.xlu0 %681
    %v684 = vadd.f32 %v669, %v682
    %v685 = vpack.c.bf16 %v684, %v684
    %687 = vrot.lane.b32.xlu0 %v685, 64
    %v688 = vpop.permute.xlu0 %687
    %v690 = vsel %vm170, %v688, 0
    %692 = vmatprep.subr.bf16.mxu0 0
    %693 = vmatpush1.bf16.msra.mxu0 %v256
    %694 = vmatprep.subr.bf16.mxu0 0
    %695 = vmatpush1.bf16.msra.mxu0 %v257
    %696 = vmatprep.subr.bf16.mxu0 0
    %697 = vmatpush1.bf16.msra.mxu0 0
    %698 = vmatprep.subr.bf16.mxu0 0
    %699 = vmatpush1.bf16.msra.mxu0 0
    %700 = vmatprep.subr.bf16.mxu0 0
    %701 = vmatpush1.bf16.msra.mxu0 0
    %702 = vmatprep.subr.bf16.mxu0 0
    %703 = vmatpush1.bf16.msra.mxu0 0
    %704 = vmatprep.subr.bf16.mxu0 0
    %705 = vmatpush1.bf16.msra.mxu0 0
    %706 = vmatprep.subr.bf16.mxu0 0
    %707 = vmatpush1.bf16.msra.mxu0 0
    %708 = vmatprep.subr.bf16.mxu0 0
    %709 = vmatpush1.bf16.msra.mxu0 0
    %710 = vmatprep.subr.bf16.mxu0 0
    %711 = vmatpush1.bf16.msra.mxu0 0
    %712 = vmatprep.subr.bf16.mxu0 0
    %713 = vmatpush1.bf16.msra.mxu0 0
    %714 = vmatprep.subr.bf16.mxu0 0
    %715 = vmatpush1.bf16.msra.mxu0 0
    %716 = vmatprep.subr.bf16.mxu0 0
    %717 = vmatpush1.bf16.msra.mxu0 0
    %718 = vmatprep.subr.bf16.mxu0 0
    %719 = vmatpush1.bf16.msra.mxu0 0
    %720 = vmatprep.subr.bf16.mxu0 0
    %721 = vmatpush1.bf16.msra.mxu0 0
    %722 = vmatprep.subr.bf16.mxu0 0
    %723 = vmatpush1.bf16.msra.mxu0 0
    %724 = vmatprep.mubr.bf16.mxu0 0
    %725 = vmatmul.mubr.bf16.gmra.mrb[0].mxu0 %v690
    %v726 = vpop.f32.mrb[0].mxu0
    %v727 = vadd.f32 0.0, %v726
    %v728 = vpop.f32.mrb[0].mxu0
    %v729 = vpop.f32.mrb[0].mxu0
    %v730 = vpop.f32.mrb[0].mxu0
    %731 = vdwg.mxu0
    %v733 = vrot.slane %v727, 6
    %v735 = vadd.f32 %v249, %v733
    %v736 = vxor.u32 %v735, 2147483648
    %v737 = vmul.f32 %v736, 1.442695
    %v738 = vpow.pop %v737
    %v739 = vadd.f32 %v738, 1.0
    %v740 = vrcp.pop %v739
    %v741 = vmul.f32 1.0, %v740
    %v742 = vadd.f32 %v727, %v317
    %v744 = vrot.slane %v742, 6
    %745 = vrot.lane.b32.xlu0 %v744, 64
    %v746 = vpop.permute.xlu0 %745
    %v748 = vmul.f32 %v741, %v746
    %750 = vrot.lane.b32.xlu0 %v748, 64
    %v751 = vpop.permute.xlu0 %750
    %v753 = vadd.f32 %v249, %v751
    %v754 = vtanh.pop %v753
    %v756 = vrot.slane %v754, 2
    %v758 = vsub.f32 %v684, %v756
    %v760 = vrot.slane %v758, 6
    %761 = vrot.lane.b32.xlu0 %v760, 96
    %v762 = vpop.permute.xlu0 %761
    %v764 = vmul.f32 %v741, %v762
    %766 = vrot.lane.b32.xlu0 %v764, 32
    %v767 = vpop.permute.xlu0 %766
    %v769 = vadd.f32 %v754, %v767
    %v770 = vpack.c.bf16 %v769, %v769
    %v772 = vrot.slane %v770, 1
    %773 = vrot.lane.b32.xlu0 %v772, 64
    %v774 = vpop.permute.xlu0 %773
    %v776 = vsel %vm170, %v774, 0
    %778 = vmatprep.subr.bf16.mxu0 0
    %779 = vmatpush1.bf16.msra.mxu0 %v256
    %780 = vmatprep.subr.bf16.mxu0 0
    %781 = vmatpush1.bf16.msra.mxu0 %v257
    %782 = vmatprep.subr.bf16.mxu0 0
    %783 = vmatpush1.bf16.msra.mxu0 0
    %784 = vmatprep.subr.bf16.mxu0 0
    %785 = vmatpush1.bf16.msra.mxu0 0
    %786 = vmatprep.subr.bf16.mxu0 0
    %787 = vmatpush1.bf16.msra.mxu0 0
    %788 = vmatprep.subr.bf16.mxu0 0
    %789 = vmatpush1.bf16.msra.mxu0 0
    %790 = vmatprep.subr.bf16.mxu0 0
    %791 = vmatpush1.bf16.msra.mxu0 0
    %792 = vmatprep.subr.bf16.mxu0 0
    %793 = vmatpush1.bf16.msra.mxu0 0
    %794 = vmatprep.subr.bf16.mxu0 0
    %795 = vmatpush1.bf16.msra.mxu0 0
    %796 = vmatprep.subr.bf16.mxu0 0
    %797 = vmatpush1.bf16.msra.mxu0 0
    %798 = vmatprep.subr.bf16.mxu0 0
    %799 = vmatpush1.bf16.msra.mxu0 0
    %800 = vmatprep.subr.bf16.mxu0 0
    %801 = vmatpush1.bf16.msra.mxu0 0
    %802 = vmatprep.subr.bf16.mxu0 0
    %803 = vmatpush1.bf16.msra.mxu0 0
    %804 = vmatprep.subr.bf16.mxu0 0
    %805 = vmatpush1.bf16.msra.mxu0 0
    %806 = vmatprep.subr.bf16.mxu0 0
    %807 = vmatpush1.bf16.msra.mxu0 0
    %808 = vmatprep.subr.bf16.mxu0 0
    %809 = vmatpush1.bf16.msra.mxu0 0
    %810 = vmatprep.mubr.bf16.mxu0 0
    %811 = vmatmul.mubr.bf16.gmra.mrb[0].mxu0 %v776
    %v812 = vpop.f32.mrb[0].mxu0
    %v813 = vadd.f32 0.0, %v812
    %v814 = vpop.f32.mrb[0].mxu0
    %v815 = vpop.f32.mrb[0].mxu0
    %v816 = vpop.f32.mrb[0].mxu0
    %817 = vdwg.mxu0
    %v819 = vrot.slane %v813, 4
    %v821 = vadd.f32 %v249, %v819
    %v822 = vxor.u32 %v821, 2147483648
    %v823 = vmul.f32 %v822, 1.442695
    %v824 = vpow.pop %v823
    %v825 = vadd.f32 %v824, 1.0
    %v826 = vrcp.pop %v825
    %v827 = vmul.f32 1.0, %v826
    %v828 = vadd.f32 %v813, %v317
    %v830 = vrot.slane %v828, 4
    %831 = vrot.lane.b32.xlu0 %v830, 64
    %v832 = vpop.permute.xlu0 %831
    %v834 = vmul.f32 %v827, %v832
    %836 = vrot.lane.b32.xlu0 %v834, 64
    %v837 = vpop.permute.xlu0 %836
    %v839 = vadd.f32 %v249, %v837
    %v840 = vtanh.pop %v839
    %v842 = vrot.slane %v840, 2
    %v844 = vsub.f32 %v769, %v842
    %v846 = vrot.slane %v844, 6
    %847 = vrot.lane.b32.xlu0 %v846, 96
    %v848 = vpop.permute.xlu0 %847
    %v850 = vmul.f32 %v827, %v848
    %852 = vrot.lane.b32.xlu0 %v850, 32
    %v853 = vpop.permute.xlu0 %852
    %v855 = vadd.f32 %v840, %v853
    %v856 = vpack.c.bf16 %v855, %v855
    %v858 = vrot.slane %v856, 2
    %859 = vrot.lane.b32.xlu0 %v858, 64
    %v860 = vpop.permute.xlu0 %859
    %v862 = vsel %vm170, %v860, 0
    %864 = vmatprep.subr.bf16.mxu0 0
    %865 = vmatpush1.bf16.msra.mxu0 %v256
    %866 = vmatprep.subr.bf16.mxu0 0
    %867 = vmatpush1.bf16.msra.mxu0 %v257
    %868 = vmatprep.subr.bf16.mxu0 0
    %869 = vmatpush1.bf16.msra.mxu0 0
    %870 = vmatprep.subr.bf16.mxu0 0
    %871 = vmatpush1.bf16.msra.mxu0 0
    %872 = vmatprep.subr.bf16.mxu0 0
    %873 = vmatpush1.bf16.msra.mxu0 0
    %874 = vmatprep.subr.bf16.mxu0 0
    %875 = vmatpush1.bf16.msra.mxu0 0
    %876 = vmatprep.subr.bf16.mxu0 0
    %877 = vmatpush1.bf16.msra.mxu0 0
    %878 = vmatprep.subr.bf16.mxu0 0
    %879 = vmatpush1.bf16.msra.mxu0 0
    %880 = vmatprep.subr.bf16.mxu0 0
    %881 = vmatpush1.bf16.msra.mxu0 0
    %882 = vmatprep.subr.bf16.mxu0 0
    %883 = vmatpush1.bf16.msra.mxu0 0
    %884 = vmatprep.subr.bf16.mxu0 0
    %885 = vmatpush1.bf16.msra.mxu0 0
    %886 = vmatprep.subr.bf16.mxu0 0
    %887 = vmatpush1.bf16.msra.mxu0 0
    %888 = vmatprep.subr.bf16.mxu0 0
    %889 = vmatpush1.bf16.msra.mxu0 0
    %890 = vmatprep.subr.bf16.mxu0 0
    %891 = vmatpush1.bf16.msra.mxu0 0
    %892 = vmatprep.subr.bf16.mxu0 0
    %893 = vmatpush1.bf16.msra.mxu0 0
    %894 = vmatprep.subr.bf16.mxu0 0
    %895 = vmatpush1.bf16.msra.mxu0 0
    %896 = vmatprep.mubr.bf16.mxu0 0
    %897 = vmatmul.mubr.bf16.gmra.mrb[0].mxu0 %v862
    %v898 = vpop.f32.mrb[0].mxu0
    %v899 = vadd.f32 0.0, %v898
    %v900 = vpop.f32.mrb[0].mxu0
    %v901 = vpop.f32.mrb[0].mxu0
    %v902 = vpop.f32.mrb[0].mxu0
    %903 = vdwg.mxu0
    %v905 = vrot.slane %v899, 2
    %v907 = vadd.f32 %v249, %v905
    %v908 = vxor.u32 %v907, 2147483648
    %v909 = vmul.f32 %v908, 1.442695
    %v910 = vpow.pop %v909
    %v911 = vadd.f32 %v910, 1.0
    %v912 = vrcp.pop %v911
    %v913 = vmul.f32 1.0, %v912
    %v914 = vadd.f32 %v899, %v317
    %v916 = vrot.slane %v914, 2
    %917 = vrot.lane.b32.xlu0 %v916, 64
    %v918 = vpop.permute.xlu0 %917
    %v920 = vmul.f32 %v913, %v918
    %922 = vrot.lane.b32.xlu0 %v920, 64
    %v923 = vpop.permute.xlu0 %922
    %v925 = vadd.f32 %v249, %v923
    %v926 = vtanh.pop %v925
    %v928 = vrot.slane %v926, 2
    %v930 = vsub.f32 %v855, %v928
    %v932 = vrot.slane %v930, 6
    %933 = vrot.lane.b32.xlu0 %v932, 96
    %v934 = vpop.permute.xlu0 %933
    %v936 = vmul.f32 %v913, %v934
    %938 = vrot.lane.b32.xlu0 %v936, 32
    %v939 = vpop.permute.xlu0 %938
    %v941 = vadd.f32 %v926, %v939
    %vm942 = vcmask 1041408
    %v943 = vsel %vm942, %v345, %v430
    %vm944 = vcmask 1043456
    %v945 = vsel %vm944, %v943, %v516
    %vm946 = vcmask 1045504
    %v947 = vsel %vm946, %v945, %v602
    %v948 = vsel %vm942, %v684, %v769
    %v949 = vsel %vm944, %v948, %v855
    %v950 = vsel %vm946, %v949, %v941
    %953 = vrot.lane.b32.xlu0 %v947, 64
    %v954 = vpop.permute.xlu0 %953
    %955 = vrot.lane.b32.xlu0 %v950, 64
    %v956 = vpop.permute.xlu0 %955
    %959 = vst.msk [vmem:[#allocation7] sm:$0xff] %vm170, %v954
    %960 = vst.msk [vmem:[#allocation7 + $0x8] sm:$0xff] %vm170, %v956
    %962 = vrot.lane.b32.xlu0 %v941, 64
    %v963 = vpop.permute.xlu0 %962
    %vm965 = vcmask 261126
    %966 = vst.msk [vmem:[#allocation8 - $0x6] sm:$0xc0] %vm965, %v963
    // Predicated region
    $region38: #{tpu_custom_call.1} parent=1 // pred_check
      _
    $region39: #{tpu_custom_call.1} parent=1 // pred_check_branch
      %968 = sbr.rel (0) target = $region41
    $region40: #{tpu_custom_call.1} parent=1 // pred_region
      %s970 = ssub.s32 256, 256
      %971 = vsyncadd [#allocation4], %s970
      %s972 = sshll.u32 [#allocation7], 4
      %s973 = int_to_ptr.vmem [resolvable:$true] %s972
      %978 = dma.vmem_to_hbm [thread:$0]  %s973, 256, %s7, [#allocation4], 128, 128, 8
    $region41: #{tpu_custom_call.1} parent=1 // pred_fallthru
      _
    // Predicated region
    $region42: #{tpu_custom_call.1} parent=1 // pred_check
      _
    $region43: #{tpu_custom_call.1} parent=1 // pred_check_branch
      %980 = sbr.rel (0) target = $region45
    $region44: #{tpu_custom_call.1} parent=1 // pred_region
      %s982 = ssub.s32 32, 32
      %983 = vsyncadd [#allocation9], %s982
      %s985 = sshll.u32 [#allocation8], 4
      %s986 = int_to_ptr.vmem [resolvable:$true] %s985
      %988 = dma.vmem_to_hbm [thread:$0]  %s986, 32, %s8, [#allocation9]
    $region45: #{tpu_custom_call.1} parent=1 // pred_fallthru
      _
    // Predicated region
    $region46: #{tpu_custom_call.1} parent=1 // pred_check
      _
    $region47: #{tpu_custom_call.1} parent=1 // pred_check_branch
      %990 = sbr.rel (0) target = $region49
    $region48: #{tpu_custom_call.1} parent=1 // pred_region
      %991 = dma.done [#allocation4], 256
    $region49: #{tpu_custom_call.1} parent=1 // pred_fallthru
      _
    // Predicated region
    $region50: #{tpu_custom_call.1} parent=1 // pred_check
      _
    $region51: #{tpu_custom_call.1} parent=1 // pred_check_branch
      %993 = sbr.rel (0) target = $region53
    $region52: #{tpu_custom_call.1} parent=1 // pred_region
      %994 = dma.done [#allocation9], 32
    $region53: #{tpu_custom_call.1} parent=1 // pred_fallthru
      _
    %995 = vsyncpa [#allocation3], 1
    %996 = vsyncpa [#allocation6], 1
    %997 = vsyncpa [#allocation4], 1
    %998 = vsyncpa [#allocation9], 1

</llo_original>
